<compile_context>
chip_gen: v7x
topology: tpu7x:2x2x1
jax: 0.10.0
libtpu: 0.0.40
codegen_flags: <defaults>
</compile_context>

<pallas_src>
import math

import jax
import jax.numpy as jnp
from jax.experimental import pallas as pl
from jax.experimental.pallas import tpu as pltpu


def _make_positional_encoding(d_model: int, max_len: int) -> jnp.ndarray:
    """Replicates the PositionalEncoding buffer: returns (max_len, d_model)."""
    # TODO(synk): the sin/cos interleave matches PyTorch only for even d_model.
    assert d_model % 2 == 0, "positional encoding assumes an even embed_dim"
    position = jnp.arange(0, max_len, dtype=jnp.float32)[:, None]             # (L, 1)
    div_term = jnp.exp(
        jnp.arange(0, d_model, 2, dtype=jnp.float32)
        * (-(math.log(10000.0) / d_model))
    )                                                                          # (E/2,)
    sin_part = jnp.sin(position * div_term)                                    # (L, E/2)
    cos_part = jnp.cos(position * div_term)                                    # (L, E/2)
    pe = jnp.stack([sin_part, cos_part], axis=-1).reshape(max_len, d_model)    # interleave
    return pe


def _ehr_embed_kernel(x_ref, w_ref, pe_ref, o_ref):
    # x_ref : (B, TS, F)   batch-first input tile (transpose fused into layout)
    # w_ref : (F, E)       linear weight (grid-invariant)
    # pe_ref: (TS, E)      positional-encoding tile with the Linear bias folded in
    # o_ref : (TS, B*E)    lane-dense output tile; lane band [b*E,(b+1)*E) == batch b
    B, TS, F = x_ref.shape
    E = w_ref.shape[1]

    w = w_ref[...].astype(jnp.float32)        # (F, E)
    pe = pe_ref[...].astype(jnp.float32)      # (TS, E)  (bias already folded in)

    for b in range(B):                        # B is small and static: unrolled
        xb = x_ref[b].astype(jnp.float32)     # (TS, F)
        if F <= 16:
            # Tiny contraction: unrolled VPU multiply-accumulate, skip the MXU.
            acc = pe
            for f in range(F):
                acc = acc + xb[:, f:f + 1] * w[f:f + 1, :]
        else:
            acc = pe + jnp.dot(xb, w, preferred_element_type=jnp.float32)
        o_ref[:, b * E:(b + 1) * E] = acc.astype(o_ref.dtype)


def _auto_seq_tile(S, B, E, F, itemsize, *, target_vmem_bytes=4 << 20, min_grid=2):
    """Largest sequence tile (multiple of 8, divisor of S) whose double-buffered
    blocks fit the VMEM target while keeping >= min_grid grid steps (v7x megacore)."""
    row_bytes = 2 * (B * E + B * F + E) * itemsize   # double-buffered blocks per seq row
    cap = max(8, target_vmem_bytes // row_bytes)
    best = 8 if S % 8 == 0 else S
    for ts in range(8, S + 1, 8):
        if S % ts == 0 and ts <= cap and (S // ts) >= min_grid:
            best = ts
    return best


def ehr_embedding(x_bsf, weight, bias, pe, *, seq_tile=None):
    """x_bsf: (B, S, F) batch-first input (PyTorch convention).
    weight: (F, E) (i.e. torch Linear weight transposed), bias: (E,), pe: (max_len, E).
    Returns (S, B, E), exactly like the PyTorch module."""
    B, S, F = x_bsf.shape
    E = weight.shape[1]
    itemsize = jnp.dtype(x_bsf.dtype).itemsize

    # Fold the Linear bias into the PE table: one fewer operand / add in the kernel.
    pe_b = (pe[:S] + bias[None, :]).astype(jnp.float32)                        # (S, E)

    ts = _auto_seq_tile(S, B, E, F, itemsize) if seq_tile is None else seq_tile
    assert S % ts == 0, "sequence length must be divisible by the sequence tile"
    # TODO(synk): ragged sequence lengths (S not tileable) fall back to a single full-S block.
    grid = (S // ts,)

    cost = pl.CostEstimate(
        flops=2 * B * S * F * E,
        transcendentals=0,
        bytes_accessed=itemsize * (B * S * F + S * B * E) + 4 * (F * E + S * E),
    )

    out2d = pl.pallas_call(
        _ehr_embed_kernel,
        out_shape=jax.ShapeDtypeStruct((S, B * E), x_bsf.dtype),
        grid=grid,
        in_specs=[
            pl.BlockSpec((B, ts, F), lambda i: (0, i, 0)),   # x tile, batch-first (no XLA transpose)
            pl.BlockSpec((F, E), lambda i: (0, 0)),          # full weight, grid-invariant
            pl.BlockSpec((ts, E), lambda i: (i, 0)),         # PE(+bias) tile
        ],
        out_specs=pl.BlockSpec((ts, B * E), lambda i: (i, 0)),   # lane-dense output rows
        compiler_params=pltpu.CompilerParams(
            dimension_semantics=("parallel",),
        ),
        cost_estimate=cost,
    )(x_bsf, weight, pe_b)

    # Row-major (S, B*E) is bit-identical to (S, B, E): free metadata reshape.
    return out2d.reshape(S, B, E)


if __name__ == "__main__":
    # small shapes consistent with the module
    B, S, FEAT, EMB = 2, 16, 4, 32
    MAX_LEN = 64

    key = jax.random.PRNGKey(0)
    k_x, k_w, k_b = jax.random.split(key, 3)

    x = jax.random.normal(k_x, (B, S, FEAT), dtype=jnp.float32)

    # deterministic parameter init (emulating nn.Linear's uniform(-1/sqrt(F), 1/sqrt(F)))
    bound = 1.0 / math.sqrt(FEAT)
    weight = jax.random.uniform(k_w, (FEAT, EMB), jnp.float32, -bound, bound)
    bias = jax.random.uniform(k_b, (EMB,), jnp.float32, -bound, bound)

    pe = _make_positional_encoding(EMB, MAX_LEN)

    out = ehr_embedding(x, weight, bias, pe)
    out = jax.block_until_ready(out)

    # reference (plain JAX) check
    ref = jnp.einsum("bsf,fe->bse", x, weight) + bias                          # (B, S, E)
    ref = jnp.transpose(ref, (1, 0, 2)) + pe[:S][:, None, :]                   # (S, B, E)
    assert out.shape == (S, B, EMB)
    assert jnp.allclose(out, ref, atol=1e-5, rtol=1e-5)

    print("KERNEL_OK")
</pallas_src>

<mosaic_0001>
module attributes {stable_mosaic.version = 11 : i64} {
  func.func @_ehr_embed_kernel(%arg0: i32, %arg1: memref<2x8x4xf32, #tpu.memory_space<vmem>>, %arg2: memref<4x32xf32, #tpu.memory_space<vmem>>, %arg3: memref<8x32xf32, #tpu.memory_space<vmem>>, %arg4: memref<8x64xf32, #tpu.memory_space<vmem>>) attributes {dimension_semantics = [#tpu.dimension_semantics<parallel>], iteration_bounds = array<i64: 2>, scalar_prefetch = 0 : i64, scratch_operands = 0 : i64, tpu.core_type = #tpu.core_type<tc>, window_params = [{transform_indices = @transform_0, window_bounds = array<i64: 2, 8, 4>}, {pipeline_mode = #tpu.pipeline_mode<synchronous>, transform_indices = @transform_1, window_bounds = array<i64: 4, 32>}, {transform_indices = @transform_2, window_bounds = array<i64: 8, 32>}, {transform_indices = @transform_3, window_bounds = array<i64: 8, 64>}]} {
    %c0 = arith.constant 0 : index
    %c0_0 = arith.constant 0 : index
    %0 = vector.load %arg2[%c0, %c0_0] : memref<4x32xf32, #tpu.memory_space<vmem>>, vector<4x32xf32>
    %c0_1 = arith.constant 0 : index
    %c0_2 = arith.constant 0 : index
    %1 = vector.load %arg3[%c0_1, %c0_2] : memref<8x32xf32, #tpu.memory_space<vmem>>, vector<8x32xf32>
    %c0_3 = arith.constant 0 : index
    %c0_4 = arith.constant 0 : index
    %c0_5 = arith.constant 0 : index
    %2 = vector.load %arg1[%c0_3, %c0_4, %c0_5] : memref<2x8x4xf32, #tpu.memory_space<vmem>>, vector<1x8x4xf32>
    %3 = vector.shape_cast %2 : vector<1x8x4xf32> to vector<8x4xf32>
    %4 = vector.extract_strided_slice %3 {offsets = [0, 0], sizes = [8, 1], strides = [1, 1]} : vector<8x4xf32> to vector<8x1xf32>
    %5 = vector.extract_strided_slice %0 {offsets = [0, 0], sizes = [1, 32], strides = [1, 1]} : vector<4x32xf32> to vector<1x32xf32>
    %6 = vector.broadcast %4 : vector<8x1xf32> to vector<8x32xf32>
    %7 = vector.broadcast %5 : vector<1x32xf32> to vector<8x32xf32>
    %8 = arith.mulf %6, %7 : vector<8x32xf32>
    %9 = arith.addf %1, %8 : vector<8x32xf32>
    %10 = vector.extract_strided_slice %3 {offsets = [0, 1], sizes = [8, 1], strides = [1, 1]} : vector<8x4xf32> to vector<8x1xf32>
    %11 = vector.extract_strided_slice %0 {offsets = [1, 0], sizes = [1, 32], strides = [1, 1]} : vector<4x32xf32> to vector<1x32xf32>
    %12 = vector.broadcast %10 : vector<8x1xf32> to vector<8x32xf32>
    %13 = vector.broadcast %11 : vector<1x32xf32> to vector<8x32xf32>
    %14 = arith.mulf %12, %13 : vector<8x32xf32>
    %15 = arith.addf %9, %14 : vector<8x32xf32>
    %16 = vector.extract_strided_slice %3 {offsets = [0, 2], sizes = [8, 1], strides = [1, 1]} : vector<8x4xf32> to vector<8x1xf32>
    %17 = vector.extract_strided_slice %0 {offsets = [2, 0], sizes = [1, 32], strides = [1, 1]} : vector<4x32xf32> to vector<1x32xf32>
    %18 = vector.broadcast %16 : vector<8x1xf32> to vector<8x32xf32>
    %19 = vector.broadcast %17 : vector<1x32xf32> to vector<8x32xf32>
    %20 = arith.mulf %18, %19 : vector<8x32xf32>
    %21 = arith.addf %15, %20 : vector<8x32xf32>
    %22 = vector.extract_strided_slice %3 {offsets = [0, 3], sizes = [8, 1], strides = [1, 1]} : vector<8x4xf32> to vector<8x1xf32>
    %23 = vector.extract_strided_slice %0 {offsets = [3, 0], sizes = [1, 32], strides = [1, 1]} : vector<4x32xf32> to vector<1x32xf32>
    %24 = vector.broadcast %22 : vector<8x1xf32> to vector<8x32xf32>
    %25 = vector.broadcast %23 : vector<1x32xf32> to vector<8x32xf32>
    %26 = arith.mulf %24, %25 : vector<8x32xf32>
    %27 = arith.addf %21, %26 : vector<8x32xf32>
    %c0_6 = arith.constant 0 : index
    %c0_7 = arith.constant 0 : index
    %28 = vector.load %arg4[%c0_6, %c0_7] : memref<8x64xf32, #tpu.memory_space<vmem>>, vector<8x32xf32>
    tpu.vector_store %arg4[%c0_6, %c0_7], %27 {strides = array<i32>} : memref<8x64xf32, #tpu.memory_space<vmem>>, vector<8x32xf32>,
    %c1 = arith.constant 1 : index
    %c0_8 = arith.constant 0 : index
    %c0_9 = arith.constant 0 : index
    %29 = vector.load %arg1[%c1, %c0_8, %c0_9] : memref<2x8x4xf32, #tpu.memory_space<vmem>>, vector<1x8x4xf32>
    %30 = vector.shape_cast %29 : vector<1x8x4xf32> to vector<8x4xf32>
    %31 = vector.extract_strided_slice %30 {offsets = [0, 0], sizes = [8, 1], strides = [1, 1]} : vector<8x4xf32> to vector<8x1xf32>
    %32 = vector.extract_strided_slice %0 {offsets = [0, 0], sizes = [1, 32], strides = [1, 1]} : vector<4x32xf32> to vector<1x32xf32>
    %33 = vector.broadcast %31 : vector<8x1xf32> to vector<8x32xf32>
    %34 = vector.broadcast %32 : vector<1x32xf32> to vector<8x32xf32>
    %35 = arith.mulf %33, %34 : vector<8x32xf32>
    %36 = arith.addf %1, %35 : vector<8x32xf32>
    %37 = vector.extract_strided_slice %30 {offsets = [0, 1], sizes = [8, 1], strides = [1, 1]} : vector<8x4xf32> to vector<8x1xf32>
    %38 = vector.extract_strided_slice %0 {offsets = [1, 0], sizes = [1, 32], strides = [1, 1]} : vector<4x32xf32> to vector<1x32xf32>
    %39 = vector.broadcast %37 : vector<8x1xf32> to vector<8x32xf32>
    %40 = vector.broadcast %38 : vector<1x32xf32> to vector<8x32xf32>
    %41 = arith.mulf %39, %40 : vector<8x32xf32>
    %42 = arith.addf %36, %41 : vector<8x32xf32>
    %43 = vector.extract_strided_slice %30 {offsets = [0, 2], sizes = [8, 1], strides = [1, 1]} : vector<8x4xf32> to vector<8x1xf32>
    %44 = vector.extract_strided_slice %0 {offsets = [2, 0], sizes = [1, 32], strides = [1, 1]} : vector<4x32xf32> to vector<1x32xf32>
    %45 = vector.broadcast %43 : vector<8x1xf32> to vector<8x32xf32>
    %46 = vector.broadcast %44 : vector<1x32xf32> to vector<8x32xf32>
    %47 = arith.mulf %45, %46 : vector<8x32xf32>
    %48 = arith.addf %42, %47 : vector<8x32xf32>
    %49 = vector.extract_strided_slice %30 {offsets = [0, 3], sizes = [8, 1], strides = [1, 1]} : vector<8x4xf32> to vector<8x1xf32>
    %50 = vector.extract_strided_slice %0 {offsets = [3, 0], sizes = [1, 32], strides = [1, 1]} : vector<4x32xf32> to vector<1x32xf32>
    %51 = vector.broadcast %49 : vector<8x1xf32> to vector<8x32xf32>
    %52 = vector.broadcast %50 : vector<1x32xf32> to vector<8x32xf32>
    %53 = arith.mulf %51, %52 : vector<8x32xf32>
    %54 = arith.addf %48, %53 : vector<8x32xf32>
    %c0_10 = arith.constant 0 : index
    %c32 = arith.constant 32 : index
    %55 = vector.load %arg4[%c0_10, %c32] : memref<8x64xf32, #tpu.memory_space<vmem>>, vector<8x32xf32>
    tpu.vector_store %arg4[%c0_10, %c32], %54 {strides = array<i32>} : memref<8x64xf32, #tpu.memory_space<vmem>>, vector<8x32xf32>,
    return
  }
  func.func @transform_0(%arg0: i32) -> (i32, i32, i32) {
    %c0_i32 = arith.constant 0 : i32
    %c0_i32_0 = arith.constant 0 : i32
    %c0_i32_1 = arith.constant 0 : i32
    return %c0_i32, %arg0, %c0_i32_0 : i32, i32, i32
  }
  func.func @transform_1(%arg0: i32) -> (i32, i32) {
    %c0_i32 = arith.constant 0 : i32
    %c0_i32_0 = arith.constant 0 : i32
    %c0_i32_1 = arith.constant 0 : i32
    return %c0_i32, %c0_i32_0 : i32, i32
  }
  func.func @transform_2(%arg0: i32) -> (i32, i32) {
    %c0_i32 = arith.constant 0 : i32
    %c0_i32_0 = arith.constant 0 : i32
    return %arg0, %c0_i32 : i32, i32
  }
  func.func @transform_3(%arg0: i32) -> (i32, i32) {
    %c0_i32 = arith.constant 0 : i32
    %c0_i32_0 = arith.constant 0 : i32
    return %arg0, %c0_i32 : i32, i32
  }
}

</mosaic_0001>

<llo_original>
// kernel: tpu_custom_call.1
$region0: #{tpu_custom_call.1}
  #allocation0 [shape = 'u32[]', space=smem, size = 0x4, offset = 0x4, fixed_abs, tag = 'smem constant byte address 0x4 - core index']
  #allocation1 [shape = 'u32[144,128]{1,0:T(1,128)}', space=vmem, size = 0x12000, scoped, tag = 'internal scratch']
  %s0 = inlined_call_operand.vmem [shape: f32[2,16,4], index: 0, kind: input, shape index: {}]
  %s1 = inlined_call_operand.vmem [shape: f32[4,32], index: 1, kind: input, shape index: {}]
  %s2 = inlined_call_operand.vmem [shape: f32[16,32], index: 2, kind: input, shape index: {}]
  %s3 = inlined_call_operand.hbm [shape: f32[16,64], index: 3, kind: output, shape index: {}]
  %s4 = sld [smem:[#allocation0]]
  $region83: #{tpu_custom_call.1} parent=0
    _
  %s6 = ssub.s32 1, %s4
  %s7 = scalar_select 0, %s6, %s4
  $region1: #{tpu_custom_call.1} parent=0
    #allocation2 [shape = 'u8[16384]{0}', space=vmem, size = 0x4000, scoped, tag = 'input window, operand 0']
    #allocation3 [shape = 'u8[8192]{0}', space=vmem, size = 0x2000, scoped, tag = 'output window, operand 0']
    #allocation4 [shape = 's32[2]{0}', space=sflag, size = 0x8, scoped, tag = 'scoped memory for tpu_custom_call.1']
    %8 = vsyncpa [#allocation4], 0
    %s9 = scalar_lea.sflag [#allocation4], 1
    %10 = vsyncpa %s9, 0
    loop: start=0, step=1, limit=4
    $region2: #{tpu_custom_call.1} parent=1 // loop_pre_header
      _
    $region3: #{tpu_custom_call.1} parent=1 // loop_header
      %s12 = sphi 0, %s16
      %p13 = scmp.ge.s32.totalorder %s12, 4
      %s22 = sphi 0, %s24
      %s25 = sphi 0, %s22
      %s26 = sphi 0, %s25
      %s42 = sphi 0, %s26
      %s46 = sphi 0, %s46
      %s48 = sphi 0, %s46
      %s49 = sphi 0, %s48
      %s63 = sphi 0, %s49
      %s69 = sphi 0, %s71
      %s72 = sphi 0, %s69
      %s73 = sphi 0, %s72
      %s89 = sphi 0, %s73
      %s95 = sphi 0, %s97
      %s98 = sphi 0, %s95
      %s99 = sphi 0, %s98
      %s115 = sphi 0, %s99
    $region4: #{tpu_custom_call.1} parent=1 // loop_header_branch
      %15 = sbr.rel (%p13) target = $region8
    $region5: #{tpu_custom_call.1} parent=1 // loop_body
      %s17 = ssub.s32 %s12, 1
      %s18 = ssub.s32 %s12, 2
      %s19 = sadd.s32 %s12, 1
      %s20 = ssub.s32 %s12, %s19
      %p21 = scmp.eq.s32.totalorder %s20, 0
      %s23 = sadd.s32 %s22, 1
      %s24 = scalar_select %p21, %s22, %s23
      %p27 = pneg %p21
      %p28 = scmp.eq.s32.totalorder %s12, 1
      %p29 = por %p27, %p28
      %p30 = scmp.ne.s32.totalorder %s22, %s25
      %p31 = scmp.eq.s32.totalorder %s12, 0
      %p32 = por %p30, %p31
      %p33 = scmp.ne.s32.totalorder %s22, %s25
      %p34 = scmp.eq.s32.totalorder %s17, 1
      %p35 = por %p33, %p34
      %p36 = scmp.ne.s32.totalorder %s25, %s26
      %p37 = scmp.eq.s32.totalorder %s17, 0
      %p38 = por %p36, %p37
      %p39 = scmp.ne.s32.totalorder %s25, %s26
      %p40 = scmp.eq.s32.totalorder %s18, 1
      %p41 = por %p39, %p40
      %p43 = scmp.ne.s32.totalorder %s26, %s42
      %p44 = scmp.eq.s32.totalorder %s18, 0
      %p45 = por %p43, %p44
      %s47 = sadd.s32 %s46, 1
      %p50 = scmp.eq.s32.totalorder %s12, 1
      %p51 = scmp.ne.s32.totalorder %s46, %s48
      %p52 = scmp.eq.s32.totalorder %s12, 0
      %p53 = por %p51, %p52
      %p54 = scmp.ne.s32.totalorder %s46, %s48
      %p55 = scmp.eq.s32.totalorder %s17, 1
      %p56 = por %p54, %p55
      %p57 = scmp.ne.s32.totalorder %s48, %s49
      %p58 = scmp.eq.s32.totalorder %s17, 0
      %p59 = por %p57, %p58
      %p60 = scmp.ne.s32.totalorder %s48, %s49
      %p61 = scmp.eq.s32.totalorder %s18, 1
      %p62 = por %p60, %p61
      %p64 = scmp.ne.s32.totalorder %s49, %s63
      %p65 = scmp.eq.s32.totalorder %s18, 0
      %p66 = por %p64, %p65
      %s67 = ssub.s32 %s12, %s19
      %p68 = scmp.eq.s32.totalorder %s67, 0
      %s70 = sadd.s32 %s69, 1
      %s71 = scalar_select %p68, %s69, %s70
      %p74 = pneg %p68
      %p75 = scmp.eq.s32.totalorder %s12, 1
      %p76 = por %p74, %p75
      %p77 = scmp.ne.s32.totalorder %s69, %s72
      %p78 = scmp.eq.s32.totalorder %s12, 0
      %p79 = por %p77, %p78
      %p80 = scmp.ne.s32.totalorder %s69, %s72
      %p81 = scmp.eq.s32.totalorder %s17, 1
      %p82 = por %p80, %p81
      %p83 = scmp.ne.s32.totalorder %s72, %s73
      %p84 = scmp.eq.s32.totalorder %s17, 0
      %p85 = por %p83, %p84
      %p86 = scmp.ne.s32.totalorder %s72, %s73
      %p87 = scmp.eq.s32.totalorder %s18, 1
      %p88 = por %p86, %p87
      %p90 = scmp.ne.s32.totalorder %s73, %s89
      %p91 = scmp.eq.s32.totalorder %s18, 0
      %p92 = por %p90, %p91
      %s93 = ssub.s32 %s12, %s19
      %p94 = scmp.eq.s32.totalorder %s93, 0
      %s96 = sadd.s32 %s95, 1
      %s97 = scalar_select %p94, %s95, %s96
      %p100 = pneg %p94
      %p101 = scmp.eq.s32.totalorder %s12, 1
      %p102 = por %p100, %p101
      %p103 = scmp.ne.s32.totalorder %s95, %s98
      %p104 = scmp.eq.s32.totalorder %s12, 0
      %p105 = por %p103, %p104
      %p106 = scmp.ne.s32.totalorder %s95, %s98
      %p107 = scmp.eq.s32.totalorder %s17, 1
      %p108 = por %p106, %p107
      %p109 = scmp.ne.s32.totalorder %s98, %s99
      %p110 = scmp.eq.s32.totalorder %s17, 0
      %p111 = por %p109, %p110
      %p112 = scmp.ne.s32.totalorder %s98, %s99
      %p113 = scmp.eq.s32.totalorder %s18, 1
      %p114 = por %p112, %p113
      %p116 = scmp.ne.s32.totalorder %s99, %s115
      %p117 = scmp.eq.s32.totalorder %s18, 0
      %p118 = por %p116, %p117
      %p119 = scmp.le.s32.totalorder 1, %s12
      %p120 = scmp.lt.s32.totalorder %s12, 3
      %p121 = pnand %p119, %p120
      %p122 = pneg %p121
      // Predicated region
      $region9: #{tpu_custom_call.1} parent=5 // pred_check
        _
      $region10: #{tpu_custom_call.1} parent=5 // pred_check_branch
        %124 = sbr.rel (%p121) target = $region12
      $region11: #{tpu_custom_call.1} parent=5 // pred_region
        %s125 = ssub.s32 %s12, 1
        // Predicated region
        $region13: #{tpu_custom_call.1} parent=11 // pred_check
          %p126 = pneg %p59
        $region14: #{tpu_custom_call.1} parent=11 // pred_check_branch
          %128 = sbr.rel (%p126) target = $region16
        $region15: #{tpu_custom_call.1} parent=11 // pred_region
          _
        $region16: #{tpu_custom_call.1} parent=11 // pred_fallthru
          _
      $region12: #{tpu_custom_call.1} parent=5 // pred_fallthru
        _
      %p129 = scmp.lt.s32.totalorder %s12, 2
      // Predicated region
      $region17: #{tpu_custom_call.1} parent=5 // pred_check
        %p130 = pneg %p129
      $region18: #{tpu_custom_call.1} parent=5 // pred_check_branch
        %132 = sbr.rel (%p130) target = $region20
      $region19: #{tpu_custom_call.1} parent=5 // pred_region
        // Predicated region
        $region21: #{tpu_custom_call.1} parent=19 // pred_check
          %p133 = pneg %p32
        $region22: #{tpu_custom_call.1} parent=19 // pred_check_branch
          %135 = sbr.rel (%p133) target = $region24
        $region23: #{tpu_custom_call.1} parent=19 // pred_region
          %s136 = sand.u32 %s22, 1
          %s137 = sand.u32 %s22, 1
          %s138 = smul.addr %s137, 16
          %s139 = scalar_lea.vmem [#allocation2], %s138
          %s140 = smul.addr %s12, 8
          %s141 = scalar_lea.vmem %s0, %s140
          // Predicated region
          $region25: #{tpu_custom_call.1} parent=23 // pred_check
            _
          $region26: #{tpu_custom_call.1} parent=23 // pred_check_branch
            %143 = sbr.rel (0) target = $region28
          $region27: #{tpu_custom_call.1} parent=23 // pred_region
            // Predicated region
            $region29: #{tpu_custom_call.1} parent=27 // pred_check
              _
            $region30: #{tpu_custom_call.1} parent=27 // pred_check_branch
              %145 = sbr.rel (0) target = $region32
            $region31: #{tpu_custom_call.1} parent=27 // pred_region
              // Predicated region
              $region44: #{tpu_custom_call.1} parent=31 // pred_check
                _
              $region45: #{tpu_custom_call.1} parent=31 // pred_check_branch
                %162 = sbr.rel (0) target = $region47
              $region46: #{tpu_custom_call.1} parent=31 // pred_region
                loop: start=0, step=1, limit=1
                $region48: #{tpu_custom_call.1} parent=46 // loop_pre_header
                  _
                $region49: #{tpu_custom_call.1} parent=46 // loop_header
                  %s164 = sphi 0, %s168
                  %p165 = scmp.ge.s32.totalorder %s164, 1
                  %s169 = sphi %s141, %s141
                  %s170 = sphi %s139, %s139
                $region50: #{tpu_custom_call.1} parent=46 // loop_header_branch
                  %167 = sbr.rel (%p165) target = $region54
                $region51: #{tpu_custom_call.1} parent=46 // loop_body
                  %v171 = vld [vmem:[%s169] sm:$0xff]
                  %172 = vst [vmem:[%s170] sm:$0xff] %v171
                  %v173 = vld [vmem:[%s169 + $0x10] sm:$0xff]
                  %174 = vst [vmem:[%s170 + $0x8] sm:$0xff] %v173
                $region52: #{tpu_custom_call.1} parent=46 // loop_footer
                  %s168 = sadd.s32 1, %s164
                $region53: #{tpu_custom_call.1} parent=46 // loop_footer_branch
                  %163 = sbr.rel target = $region49
                $region54: #{tpu_custom_call.1} parent=46 // loop_exit
                  _
              $region47: #{tpu_custom_call.1} parent=31 // pred_fallthru
                _
              // Predicated region
              $region55: #{tpu_custom_call.1} parent=31 // pred_check
                _
              $region56: #{tpu_custom_call.1} parent=31 // pred_check_branch
                %176 = sbr.rel target = $region58
              $region57: #{tpu_custom_call.1} parent=31 // pred_region
                _
              $region58: #{tpu_custom_call.1} parent=31 // pred_fallthru
                _
            $region32: #{tpu_custom_call.1} parent=27 // pred_fallthru
              _
            // Predicated region
            $region33: #{tpu_custom_call.1} parent=27 // pred_check
              _
            $region34: #{tpu_custom_call.1} parent=27 // pred_check_branch
              %147 = sbr.rel target = $region36
            $region35: #{tpu_custom_call.1} parent=27 // pred_region
              loop: start=0, step=1, limit=1
              $region37: #{tpu_custom_call.1} parent=35 // loop_pre_header
                _
              $region38: #{tpu_custom_call.1} parent=35 // loop_header
                %s150 = sphi 0, %s154
                %p151 = scmp.ge.s32.totalorder %s150, 1
                %s155 = sphi %s141, %s141
                %s156 = sphi %s139, %s139
              $region39: #{tpu_custom_call.1} parent=35 // loop_header_branch
                %153 = sbr.rel (%p151) target = $region43
              $region40: #{tpu_custom_call.1} parent=35 // loop_body
                %v157 = vld [vmem:[%s155] sm:$0xff]
                %158 = vst [vmem:[%s156] sm:$0xff] %v157
                %v159 = vld [vmem:[%s155 + $0x10] sm:$0xff]
                %160 = vst [vmem:[%s156 + $0x8] sm:$0xff] %v159
              $region41: #{tpu_custom_call.1} parent=35 // loop_footer
                %s154 = sadd.s32 1, %s150
              $region42: #{tpu_custom_call.1} parent=35 // loop_footer_branch
                %149 = sbr.rel target = $region38
              $region43: #{tpu_custom_call.1} parent=35 // loop_exit
                _
            $region36: #{tpu_custom_call.1} parent=27 // pred_fallthru
              _
          $region28: #{tpu_custom_call.1} parent=23 // pred_fallthru
            _
          %177 = vnop
        $region24: #{tpu_custom_call.1} parent=19 // pred_fallthru
          _
        // Predicated region
        $region59: #{tpu_custom_call.1} parent=19 // pred_check
          %p178 = pneg %p79
        $region60: #{tpu_custom_call.1} parent=19 // pred_check_branch
          %180 = sbr.rel (%p178) target = $region62
        $region61: #{tpu_custom_call.1} parent=19 // pred_region
          %p181 = scmp.lt.s32.totalorder %s12, 1
          %s182 = scalar_select %p181, %s12, 1
          %s183 = smul.addr %s182, 8
          %s184 = scalar_lea.vmem %s2, %s183
        $region62: #{tpu_custom_call.1} parent=19 // pred_fallthru
          _
      $region20: #{tpu_custom_call.1} parent=5 // pred_fallthru
        _
      %p185 = scmp.le.s32.totalorder 1, %s12
      %p186 = scmp.lt.s32.totalorder %s12, 3
      %p187 = pnand %p185, %p186
      %p188 = pneg %p187
      // Predicated region
      $region63: #{tpu_custom_call.1} parent=5 // pred_check
        _
      $region64: #{tpu_custom_call.1} parent=5 // pred_check_branch
        %190 = sbr.rel (%p187) target = $region66
      $region65: #{tpu_custom_call.1} parent=5 // pred_region
        %s191 = ssub.s32 %s12, 1
        %s192 = sand.u32 %s25, 1
        %s193 = sand.u32 %s25, 1
        %s194 = smul.addr %s193, 16
        %s195 = scalar_lea.vmem [#allocation2], %s194
        // Predicated region
        $region67: #{tpu_custom_call.1} parent=65 // pred_check
          %p196 = pneg %p38
        $region68: #{tpu_custom_call.1} parent=65 // pred_check_branch
          %198 = sbr.rel (%p196) target = $region70
        $region69: #{tpu_custom_call.1} parent=65 // pred_region
          _
        $region70: #{tpu_custom_call.1} parent=65 // pred_fallthru
          _
        %s199 = sand.u32 %s25, 1
        %s200 = sand.u32 %s25, 1
        %s201 = smul.addr %s200, 16
        %s202 = scalar_lea.vmem [#allocation2], %s201
        %p203 = pneg %p38
        %p204 = pneg %p35
        %p205 = pneg %p59
        %p206 = pneg %p56
        %p207 = scmp.lt.s32.totalorder %s17, 1
        %s208 = scalar_select %p207, %s17, 1
        %s209 = smul.addr %s208, 8
        %s210 = scalar_lea.vmem %s2, %s209
        %p211 = pneg %p85
        %p212 = pneg %p82
        %p213 = pneg %p111
        %p214 = pneg %p108
        %s215 = sand.u32 %s98, 1
        %s216 = scalar_lea.sflag [#allocation4], %s215
        %s217 = sand.u32 %s98, 1
        %s218 = smul.addr %s217, 8
        %s219 = scalar_lea.vmem [#allocation3], %s218
        %p220 = scmp.lt.s32.totalorder %s17, 1
        %s221 = scalar_select %p220, %s17, 1
        %s222 = smul.addr %s221, 8
        %s223 = scalar_lea.vmem %s2, %s222
        %v224 = vld [vmem:[%s1] sm:$0xf]
        %v225 = vld [vmem:[%s223] sm:$0xff]
        %v226 = vld [vmem:[%s195] sm:$0xff]
        %228 = vset.pattern.permute.xlu0 0
        %229 = vperm.xlu0 %228, %v226
        %v230 = vpop.permute.xlu0 %229
        %v232 = vlaneseq
        %v233 = vshrl.u32 %v232, 7
        %v234 = vsub.s32 0, %v233
        %v235 = vrot.slane %v224, %v234
        %v236 = vmul.f32 %v230, %v235
        %v237 = vadd.f32 %v225, %v236
        %238 = vset.pattern.permute.xlu0 1
        %239 = vperm.xlu0 %238, %v226
        %v240 = vpop.permute.xlu0 %239
        %v242 = vlaneseq
        %v243 = vshrl.u32 %v242, 7
        %v244 = vsub.s32 1, %v243
        %v245 = vrot.slane %v224, %v244
        %v246 = vmul.f32 %v240, %v245
        %v247 = vadd.f32 %v237, %v246
        %248 = vset.pattern.permute.xlu0 2
        %249 = vperm.xlu0 %248, %v226
        %v250 = vpop.permute.xlu0 %249
        %v252 = vlaneseq
        %v253 = vshrl.u32 %v252, 7
        %v254 = vsub.s32 2, %v253
        %v255 = vrot.slane %v224, %v254
        %v256 = vmul.f32 %v250, %v255
        %v257 = vadd.f32 %v247, %v256
        %258 = vset.pattern.permute.xlu0 3
        %259 = vperm.xlu0 %258, %v226
        %v260 = vpop.permute.xlu0 %259
        %v262 = vlaneseq
        %v263 = vshrl.u32 %v262, 7
        %v264 = vsub.s32 3, %v263
        %v265 = vrot.slane %v224, %v264
        %v266 = vmul.f32 %v260, %v265
        %v267 = vadd.f32 %v257, %v266
        %vm268 = vcmask 261120
        %269 = vst.msk [vmem:[%s219] sm:$0xff] %vm268, %v267
        %s270 = scalar_lea.vmem %s195, 8 [#allocation2]
        %v271 = vld [vmem:[%s270] sm:$0xff]
        %273 = vset.pattern.permute.xlu0 0
        %274 = vperm.xlu0 %273, %v271
        %v275 = vpop.permute.xlu0 %274
        %v277 = vmul.f32 %v275, %v235
        %v278 = vadd.f32 %v225, %v277
        %279 = vset.pattern.permute.xlu0 1
        %280 = vperm.xlu0 %279, %v271
        %v281 = vpop.permute.xlu0 %280
        %v283 = vmul.f32 %v281, %v245
        %v284 = vadd.f32 %v278, %v283
        %285 = vset.pattern.permute.xlu0 2
        %286 = vperm.xlu0 %285, %v271
        %v287 = vpop.permute.xlu0 %286
        %v289 = vmul.f32 %v287, %v255
        %v290 = vadd.f32 %v284, %v289
        %291 = vset.pattern.permute.xlu0 3
        %292 = vperm.xlu0 %291, %v271
        %v293 = vpop.permute.xlu0 %292
        %v295 = vmul.f32 %v293, %v265
        %v296 = vadd.f32 %v290, %v295
        %298 = vrot.lane.b32.xlu0 %v296, 32
        %v299 = vpop.permute.xlu0 %298
        %vm301 = vcmask 523520
        %302 = vst.msk [vmem:[%s219] sm:$0xff] %vm301, %v299
        %s303 = sand.u32 %s98, 1
        %s304 = scalar_lea.sflag [#allocation4], %s303
        %s305 = sand.u32 %s98, 1
        %s306 = smul.addr %s305, 8
        %s307 = scalar_lea.vmem [#allocation3], %s306
        // Predicated region
        $region71: #{tpu_custom_call.1} parent=65 // pred_check
          %p308 = pneg %p108
        $region72: #{tpu_custom_call.1} parent=65 // pred_check_branch
          %310 = sbr.rel (%p308) target = $region74
        $region73: #{tpu_custom_call.1} parent=65 // pred_region
          %s312 = ssub.s32 128, 128
          %313 = vsyncadd %s304, %s312
          %s314 = smul.addr %s17, 128
          %s315 = scalar_lea.hbm %s3, %s314
          %s317 = sshll.u32 %s307, 4
          %s318 = int_to_ptr.vmem [resolvable:$true] %s317
          %320 = dma.vmem_to_hbm [thread:$0]  %s318, 128, %s315, %s304
        $region74: #{tpu_custom_call.1} parent=65 // pred_fallthru
          _
      $region66: #{tpu_custom_call.1} parent=5 // pred_fallthru
        _
      %p321 = scmp.le.s32.totalorder 2, %s12
      // Predicated region
      $region75: #{tpu_custom_call.1} parent=5 // pred_check
        %p322 = pneg %p321
      $region76: #{tpu_custom_call.1} parent=5 // pred_check_branch
        %324 = sbr.rel (%p322) target = $region78
      $region77: #{tpu_custom_call.1} parent=5 // pred_region
        %s325 = ssub.s32 %s12, 2
        // Predicated region
        $region79: #{tpu_custom_call.1} parent=77 // pred_check
          %p326 = pneg %p114
        $region80: #{tpu_custom_call.1} parent=77 // pred_check_branch
          %328 = sbr.rel (%p326) target = $region82
        $region81: #{tpu_custom_call.1} parent=77 // pred_region
          %s329 = sand.u32 %s99, 1
          %s330 = scalar_lea.sflag [#allocation4], %s329
          %s331 = sand.u32 %s99, 1
          %s332 = smul.addr %s331, 8
          %s333 = scalar_lea.vmem [#allocation3], %s332
          %334 = dma.done %s330, 128
        $region82: #{tpu_custom_call.1} parent=77 // pred_fallthru
          _
      $region78: #{tpu_custom_call.1} parent=5 // pred_fallthru
        _
    $region6: #{tpu_custom_call.1} parent=1 // loop_footer
      %s16 = sadd.s32 1, %s12
    $region7: #{tpu_custom_call.1} parent=1 // loop_footer_branch
      %11 = sbr.rel target = $region3
    $region8: #{tpu_custom_call.1} parent=1 // loop_exit
      _
    %335 = vsyncpa [#allocation4], 1
    %s336 = scalar_lea.sflag [#allocation4], 1
    %337 = vsyncpa %s336, 1

</llo_original>
